<compile_context>
chip_gen: v7x
topology: tpu7x:2x2x1
jax: 0.10.0
libtpu: 0.0.40
codegen_flags: <defaults>
</compile_context>

<pallas_src>
import functools

import jax
import jax.numpy as jnp
from jax import lax
from jax.experimental import pallas as pl
from jax.experimental.pallas import tpu as pltpu

LANES = 128
MAX_BLOCK_ROWS = 1024   # 1024 x 128 x f32 = 512 KiB / buffer -> ~1 MiB double-buffered
NUM_SPLITS = 2          # shard the reduction across the 2 TensorCores on v7x


def _mse_sum_kernel(x_ref, out_ref, *, target, n_valid, block_rows,
                    blocks_per_split):
    # x_ref:   VMEM [block_rows, LANES] tile of the flattened prediction (original dtype)
    # out_ref: VMEM [8, LANES] f32 per-split partial-sum accumulator,
    #          resident across the inner (reduction) grid axis.
    c = pl.program_id(0)   # split index ("parallel": one per TC on v7x)
    i = pl.program_id(1)   # reduction step within this split ("arbitrary")

    @pl.when(i == 0)
    def _init():
        out_ref[...] = jnp.zeros_like(out_ref)

    # Global flat element index for every element of this *logical* block.
    # The index_map clamps duplicate / out-of-range blocks onto valid data;
    # this mask (built from the unclamped logical block id) zeroes their
    # contribution, so neither grid-edge OOB rows nor wrapper tail padding
    # affect the result.
    logical_block = c * blocks_per_split + i
    row0 = logical_block * block_rows
    row_ids = lax.broadcasted_iota(jnp.int32, (block_rows, LANES), 0) + row0
    lane_ids = lax.broadcasted_iota(jnp.int32, (block_rows, LANES), 1)
    gidx = row_ids * LANES + lane_ids

    x = x_ref[...].astype(jnp.float32)
    d = jnp.where(gidx < n_valid, x - jnp.float32(target), jnp.float32(0.0))
    sq = d * d
    # Fold [block_rows, LANES] into a vreg-shaped [8, LANES] partial with pure
    # VPU adds (the reshape is a layout-preserving tile view for f32).
    out_ref[...] += jnp.sum(sq.reshape(block_rows // 8, 8, LANES), axis=0)


def adversarial_loss(prediction, is_real_image, real_label=1.0, fake_label=0.0):
    """LSGAN adversarial loss: MSELoss(prediction, target_label broadcast)."""
    # `is_real_image` is a static Python bool (mirrors `if is_real_image:`).
    target = float(real_label) if is_real_image else float(fake_label)
    n = int(prediction.size)

    flat = prediction.reshape(-1)   # keep original dtype; cast per-tile in-kernel

    # Row quantum = native sublane tiling for the dtype so block/row counts
    # stay layout-friendly (f32: 8, bf16/f16: 16, int8/fp8: 32 sublanes).
    itemsize = jnp.dtype(prediction.dtype).itemsize
    sublane_mult = {4: 8, 2: 16, 1: 32}.get(itemsize, 8)
    row_quantum = sublane_mult * LANES

    n_pad = pl.cdiv(n, row_quantum) * row_quantum
    if n_pad > n:
        # Only pad out the final partial row-group; the padded values are
        # irrelevant (the in-kernel mask uses the true element count n).
        flat = jnp.pad(flat, (0, n_pad - n))
    rows = n_pad // LANES
    x2d = flat.reshape(rows, LANES)

    block_rows = min(MAX_BLOCK_ROWS, rows)
    total_blocks = pl.cdiv(rows, block_rows)
    blocks_per_split = pl.cdiv(total_blocks, NUM_SPLITS)
    grid = (NUM_SPLITS, blocks_per_split)

    def x_index_map(c, i):
        # Clamp so duplicate tail blocks still DMA in-bounds data; their
        # contribution is masked off inside the kernel.
        return (jnp.minimum(c * blocks_per_split + i, total_blocks - 1), 0)

    kernel = functools.partial(
        _mse_sum_kernel,
        target=target,
        n_valid=n,
        block_rows=block_rows,
        blocks_per_split=blocks_per_split,
    )

    partials = pl.pallas_call(
        kernel,
        out_shape=jax.ShapeDtypeStruct((NUM_SPLITS * 8, LANES), jnp.float32),
        grid=grid,
        in_specs=[pl.BlockSpec((block_rows, LANES), x_index_map)],
        out_specs=pl.BlockSpec((8, LANES), lambda c, i: (c, 0)),
        compiler_params=pltpu.CompilerParams(
            dimension_semantics=("parallel", "arbitrary"),
        ),
    )(x2d)

    # Tiny final cross-lane reduce + mean normalization in plain XLA.
    return jnp.sum(partials) / n


if __name__ == "__main__":
    # register_buffer equivalents
    real_label = 1.0
    fake_label = 0.0

    key = jax.random.PRNGKey(0)
    test_shapes = [
        (2, 4, 16, 16),    # small NCHW discriminator map (lane-aligned)
        (2, 1, 30, 30),    # PatchGAN-style map, N not a multiple of 128 (mask path)
        (8, 8, 48, 64),    # multi-block: exercises both splits + partial edge block
    ]

    ok = True
    for idx, shape in enumerate(test_shapes):
        k = jax.random.fold_in(key, idx)
        prediction = jax.random.normal(k, shape, dtype=jnp.float32)
        for is_real in (True, False):
            loss = adversarial_loss(prediction, is_real, real_label, fake_label)
            loss = jax.block_until_ready(loss)
            tgt = real_label if is_real else fake_label
            ref = jnp.mean((prediction - tgt) ** 2)
            if not jnp.allclose(loss, ref, rtol=1e-5, atol=1e-6):
                ok = False
                print("MISMATCH", shape, is_real, float(loss), float(ref))

    if ok:
        print("KERNEL_OK")
</pallas_src>

<mosaic_0001>
module attributes {stable_mosaic.version = 11 : i64} {
  func.func @_mse_sum_kernel(%arg0: i32, %arg1: i32, %arg2: memref<16x128xf32, #tpu.memory_space<vmem>>, %arg3: memref<8x128xf32, #tpu.memory_space<vmem>>) attributes {dimension_semantics = [#tpu.dimension_semantics<parallel>, #tpu.dimension_semantics<arbitrary>], iteration_bounds = array<i64: 2, 1>, scalar_prefetch = 0 : i64, scratch_operands = 0 : i64, tpu.core_type = #tpu.core_type<tc>, window_params = [{transform_indices = @transform_0, window_bounds = array<i64: 16, 128>}, {transform_indices = @transform_1, window_bounds = array<i64: 8, 128>}]} {
    %c0_i32 = arith.constant 0 : i32
    %0 = arith.cmpi eq, %arg1, %c0_i32 : i32
    %1 = arith.extui %0 : i1 to i32
    %c0_i32_0 = arith.constant 0 : i32
    %2 = arith.cmpi ne, %1, %c0_i32_0 : i32
    scf.if %2 {
      %cst_8 = arith.constant 0.000000e+00 : f32
      %26 = vector.broadcast %cst_8 : f32 to vector<8x128xf32>
      %c0_9 = arith.constant 0 : index
      %c0_10 = arith.constant 0 : index
      %27 = vector.load %arg3[%c0_9, %c0_10] : memref<8x128xf32, #tpu.memory_space<vmem>>, vector<8x128xf32>
      tpu.vector_store %arg3[%c0_9, %c0_10], %26 {strides = array<i32>} : memref<8x128xf32, #tpu.memory_space<vmem>>, vector<8x128xf32>,
    } else {
    }
    %c1_i32 = arith.constant 1 : i32
    %3 = arith.muli %arg0, %c1_i32 : i32
    %4 = arith.addi %3, %arg1 : i32
    %c16_i32 = arith.constant 16 : i32
    %5 = arith.muli %4, %c16_i32 : i32
    %6 = tpu.iota {dimensions = array<i32: 0>} : vector<16x128xi32>
    %7 = vector.broadcast %5 : i32 to vector<16x128xi32>
    %8 = arith.addi %6, %7 : vector<16x128xi32>
    %9 = tpu.iota {dimensions = array<i32: 1>} : vector<16x128xi32>
    %c128_i32 = arith.constant 128 : i32
    %10 = vector.broadcast %c128_i32 : i32 to vector<16x128xi32>
    %11 = arith.muli %8, %10 : vector<16x128xi32>
    %12 = arith.addi %11, %9 : vector<16x128xi32>
    %c0 = arith.constant 0 : index
    %c0_1 = arith.constant 0 : index
    %13 = vector.load %arg2[%c0, %c0_1] : memref<16x128xf32, #tpu.memory_space<vmem>>, vector<16x128xf32>
    %c2048_i32 = arith.constant 2048 : i32
    %14 = vector.broadcast %c2048_i32 : i32 to vector<16x128xi32>
    %15 = arith.cmpi slt, %12, %14 : vector<16x128xi32>
    %cst = arith.constant 1.000000e+00 : f32
    %16 = vector.broadcast %cst : f32 to vector<16x128xf32>
    %17 = arith.subf %13, %16 : vector<16x128xf32>
    %cst_2 = arith.constant 0.000000e+00 : f32
    %18 = vector.broadcast %cst_2 : f32 to vector<16x128xf32>
    %19 = arith.select %15, %17, %18 : vector<16x128xi1>, vector<16x128xf32>
    %20 = arith.mulf %19, %19 : vector<16x128xf32>
    %c0_3 = arith.constant 0 : index
    %c0_4 = arith.constant 0 : index
    %21 = vector.load %arg3[%c0_3, %c0_4] : memref<8x128xf32, #tpu.memory_space<vmem>>, vector<8x128xf32>
    %22 = vector.shape_cast %20 : vector<16x128xf32> to vector<2x8x128xf32>
    %cst_5 = arith.constant dense<0.000000e+00> : vector<8x128xf32>
    %23 = vector.multi_reduction <add>, %22, %cst_5 [0] : vector<2x8x128xf32> to vector<8x128xf32>
    %24 = arith.addf %21, %23 : vector<8x128xf32>
    %c0_6 = arith.constant 0 : index
    %c0_7 = arith.constant 0 : index
    %25 = vector.load %arg3[%c0_6, %c0_7] : memref<8x128xf32, #tpu.memory_space<vmem>>, vector<8x128xf32>
    tpu.vector_store %arg3[%c0_6, %c0_7], %24 {strides = array<i32>} : memref<8x128xf32, #tpu.memory_space<vmem>>, vector<8x128xf32>,
    return
  }
  func.func @transform_0(%arg0: i32, %arg1: i32) -> (i32, i32) {
    %c1_i32 = arith.constant 1 : i32
    %0 = arith.muli %arg0, %c1_i32 : i32
    %1 = arith.addi %0, %arg1 : i32
    %c0_i32 = arith.constant 0 : i32
    %2 = arith.minsi %1, %c0_i32 : i32
    %c0_i32_0 = arith.constant 0 : i32
    %c0_i32_1 = arith.constant 0 : i32
    return %2, %c0_i32_0 : i32, i32
  }
  func.func @transform_1(%arg0: i32, %arg1: i32) -> (i32, i32) {
    %c0_i32 = arith.constant 0 : i32
    %c0_i32_0 = arith.constant 0 : i32
    return %arg0, %c0_i32 : i32, i32
  }
}

</mosaic_0001>

<llo_original>
// kernel: tpu_custom_call.1
$region0: #{tpu_custom_call.1}
  #allocation0 [shape = 'u32[]', space=smem, size = 0x4, offset = 0x4, fixed_abs, tag = 'smem constant byte address 0x4 - core index']
  #allocation1 [shape = 'u32[144,128]{1,0:T(1,128)}', space=vmem, size = 0x12000, scoped, tag = 'internal scratch']
  %s0 = inlined_call_operand.hbm [shape: f32[16,128], index: 0, kind: input, shape index: {}]
  %s1 = inlined_call_operand.hbm [shape: f32[16,128], index: 1, kind: output, shape index: {}]
  %s2 = sld [smem:[#allocation0]]
  $region45: #{tpu_custom_call.1} parent=0
    _
  %s4 = ssub.s32 1, %s2
  %s5 = scalar_select 0, %s4, %s2
  $region1: #{tpu_custom_call.1} parent=0
    #allocation2 [shape = 'u8[16384]{0}', space=vmem, size = 0x4000, scoped, tag = 'input window, operand 0']
    #allocation3 [shape = 's32[2]{0}', space=sflag, size = 0x8, scoped, tag = 'scoped memory for tpu_custom_call.1']
    #allocation4 [shape = 's32[2]{0}', space=sflag, size = 0x8, scoped, tag = 'scoped memory for tpu_custom_call.1']
    #allocation5 [shape = 'u8[8192]{0}', space=vmem, size = 0x2000, scoped, tag = 'output window, operand 0']
    %6 = vsyncpa [#allocation3], 0
    %s7 = scalar_lea.sflag [#allocation3], 1
    %8 = vsyncpa %s7, 0
    %9 = vsyncpa [#allocation4], 0
    %s10 = scalar_lea.sflag [#allocation4], 1
    %11 = vsyncpa %s10, 0
    loop: start=0, step=1, limit=4
    $region2: #{tpu_custom_call.1} parent=1 // loop_pre_header
      _
    $region3: #{tpu_custom_call.1} parent=1 // loop_header
      %s13 = sphi 0, %s17
      %p14 = scmp.ge.s32.totalorder %s13, 4
      %s20 = sphi 0, %s32
      %s21 = sphi 0, %s28
      %s22 = sphi 0, %s20
      %s23 = sphi 0, %s21
      %s24 = sphi 0, %s22
      %s25 = sphi 0, %s23
      %s41 = sphi 0, %s43
      %s44 = sphi 0, %s41
      %s45 = sphi 0, %s44
      %s61 = sphi 0, %s45
      %s67 = sphi 0, %s69
      %s70 = sphi 0, %s67
      %s71 = sphi 0, %s70
      %s87 = sphi 0, %s71
    $region4: #{tpu_custom_call.1} parent=1 // loop_header_branch
      %16 = sbr.rel (%p14) target = $region8
    $region5: #{tpu_custom_call.1} parent=1 // loop_body
      %s18 = ssub.s32 %s13, 1
      %s19 = ssub.s32 %s13, 2
      %s26 = sadd.s32 1, %s21
      %p27 = scmp.ge.s32.totalorder %s26, 1
      %s28 = scalar_select %p27, 0, %s26
      %s29 = sadd.s32 1, %s20
      %s30 = scalar_select %p27, %s29, %s20
      %p31 = scmp.ge.s32.totalorder %s30, 2
      %s32 = scalar_select %p31, 0, %s30
      %s33 = sadd.s32 %s20, %s21
      %p34 = scmp.lt.s32.totalorder %s33, 0
      %s35 = scalar_select %p34, %s33, 0
      %s36 = sadd.s32 %s32, %s28
      %p37 = scmp.lt.s32.totalorder %s36, 0
      %s38 = scalar_select %p37, %s36, 0
      %s39 = ssub.s32 %s35, %s38
      %p40 = scmp.eq.s32.totalorder %s39, 0
      %s42 = sadd.s32 %s41, 1
      %s43 = scalar_select %p40, %s41, %s42
      %p46 = pneg %p40
      %p47 = scmp.eq.s32.totalorder %s13, 1
      %p48 = por %p46, %p47
      %p49 = scmp.ne.s32.totalorder %s41, %s44
      %p50 = scmp.eq.s32.totalorder %s13, 0
      %p51 = por %p49, %p50
      %p52 = scmp.ne.s32.totalorder %s41, %s44
      %p53 = scmp.eq.s32.totalorder %s18, 1
      %p54 = por %p52, %p53
      %p55 = scmp.ne.s32.totalorder %s44, %s45
      %p56 = scmp.eq.s32.totalorder %s18, 0
      %p57 = por %p55, %p56
      %p58 = scmp.ne.s32.totalorder %s44, %s45
      %p59 = scmp.eq.s32.totalorder %s19, 1
      %p60 = por %p58, %p59
      %p62 = scmp.ne.s32.totalorder %s45, %s61
      %p63 = scmp.eq.s32.totalorder %s19, 0
      %p64 = por %p62, %p63
      %s65 = ssub.s32 %s20, %s32
      %p66 = scmp.eq.s32.totalorder %s65, 0
      %s68 = sadd.s32 %s67, 1
      %s69 = scalar_select %p66, %s67, %s68
      %p72 = pneg %p66
      %p73 = scmp.eq.s32.totalorder %s13, 1
      %p74 = por %p72, %p73
      %p75 = scmp.ne.s32.totalorder %s67, %s70
      %p76 = scmp.eq.s32.totalorder %s13, 0
      %p77 = por %p75, %p76
      %p78 = scmp.ne.s32.totalorder %s67, %s70
      %p79 = scmp.eq.s32.totalorder %s18, 1
      %p80 = por %p78, %p79
      %p81 = scmp.ne.s32.totalorder %s70, %s71
      %p82 = scmp.eq.s32.totalorder %s18, 0
      %p83 = por %p81, %p82
      %p84 = scmp.ne.s32.totalorder %s70, %s71
      %p85 = scmp.eq.s32.totalorder %s19, 1
      %p86 = por %p84, %p85
      %p88 = scmp.ne.s32.totalorder %s71, %s87
      %p89 = scmp.eq.s32.totalorder %s19, 0
      %p90 = por %p88, %p89
      %p91 = scmp.le.s32.totalorder 1, %s13
      %p92 = scmp.lt.s32.totalorder %s13, 3
      %p93 = pnand %p91, %p92
      %p94 = pneg %p93
      // Predicated region
      $region9: #{tpu_custom_call.1} parent=5 // pred_check
        _
      $region10: #{tpu_custom_call.1} parent=5 // pred_check_branch
        %96 = sbr.rel (%p93) target = $region12
      $region11: #{tpu_custom_call.1} parent=5 // pred_region
        %s97 = ssub.s32 %s13, 1
      $region12: #{tpu_custom_call.1} parent=5 // pred_fallthru
        _
      %p98 = scmp.lt.s32.totalorder %s13, 2
      // Predicated region
      $region13: #{tpu_custom_call.1} parent=5 // pred_check
        %p99 = pneg %p98
      $region14: #{tpu_custom_call.1} parent=5 // pred_check_branch
        %101 = sbr.rel (%p99) target = $region16
      $region15: #{tpu_custom_call.1} parent=5 // pred_region
        // Predicated region
        $region17: #{tpu_custom_call.1} parent=15 // pred_check
          %p102 = pneg %p51
        $region18: #{tpu_custom_call.1} parent=15 // pred_check_branch
          %104 = sbr.rel (%p102) target = $region20
        $region19: #{tpu_custom_call.1} parent=15 // pred_region
          %s105 = sand.u32 %s41, 1
          %s106 = scalar_lea.sflag [#allocation3], %s105
          %s107 = sand.u32 %s41, 1
          %s108 = smul.addr %s107, 16
          %s109 = scalar_lea.vmem [#allocation2], %s108
          %s110 = sadd.s32 %s20, %s21
          %p111 = scmp.lt.s32.totalorder %s110, 0
          %s112 = scalar_select %p111, %s110, 0
          %s113 = smul.u32 2, %s112
          %s115 = ssub.s32 256, 256
          %116 = vsyncadd %s106, %s115
          %s117 = smul.addr %s113, 128
          %s118 = scalar_lea.hbm %s0, %s117
          %s119 = sshll.u32 %s109, 4
          %s120 = int_to_ptr.vmem [resolvable:$true] %s119
          %125 = dma.hbm_to_vmem [thread:$0]  %s118, 256, %s120, %s106, 128, 128, 8
        $region20: #{tpu_custom_call.1} parent=15 // pred_fallthru
          _
      $region16: #{tpu_custom_call.1} parent=5 // pred_fallthru
        _
      %p126 = scmp.le.s32.totalorder 1, %s13
      %p127 = scmp.lt.s32.totalorder %s13, 3
      %p128 = pnand %p126, %p127
      %p129 = pneg %p128
      // Predicated region
      $region21: #{tpu_custom_call.1} parent=5 // pred_check
        _
      $region22: #{tpu_custom_call.1} parent=5 // pred_check_branch
        %131 = sbr.rel (%p128) target = $region24
      $region23: #{tpu_custom_call.1} parent=5 // pred_region
        %s132 = ssub.s32 %s13, 1
        %s133 = sand.u32 %s44, 1
        %s134 = scalar_lea.sflag [#allocation3], %s133
        %s135 = sand.u32 %s44, 1
        %s136 = smul.addr %s135, 16
        %s137 = scalar_lea.vmem [#allocation2], %s136
        // Predicated region
        $region25: #{tpu_custom_call.1} parent=23 // pred_check
          %p138 = pneg %p57
        $region26: #{tpu_custom_call.1} parent=23 // pred_check_branch
          %140 = sbr.rel (%p138) target = $region28
        $region27: #{tpu_custom_call.1} parent=23 // pred_region
          %141 = dma.done %s134, 256
        $region28: #{tpu_custom_call.1} parent=23 // pred_fallthru
          _
        %s142 = sand.u32 %s44, 1
        %s143 = scalar_lea.sflag [#allocation3], %s142
        %s144 = sand.u32 %s44, 1
        %s145 = smul.addr %s144, 16
        %s146 = scalar_lea.vmem [#allocation2], %s145
        %p147 = pneg %p57
        %p148 = pneg %p54
        %p149 = pneg %p83
        %p150 = pneg %p80
        %s151 = sand.u32 %s70, 1
        %s152 = scalar_lea.sflag [#allocation4], %s151
        %s153 = sand.u32 %s70, 1
        %s154 = smul.addr %s153, 8
        %s155 = scalar_lea.vmem [#allocation5], %s154
        %s156 = sadd.s32 %s22, %s23
        %p157 = scmp.lt.s32.totalorder %s156, 0
        %s158 = scalar_select %p157, %s156, 0
        %s159 = smul.u32 2, %s158
        %p160 = scmp.eq.s32.totalorder %s23, 0
        // Predicated region
        $region29: #{tpu_custom_call.1} parent=23 // pred_check
          %p161 = pneg %p160
        $region30: #{tpu_custom_call.1} parent=23 // pred_check_branch
          %163 = sbr.rel (%p161) target = $region32
        $region31: #{tpu_custom_call.1} parent=23 // pred_region
          %164 = vst [vmem:[%s155] sm:$0xff] 0.0
        $region32: #{tpu_custom_call.1} parent=23 // pred_fallthru
          _
        %s165 = sadd.s32 %s22, %s23
        %s166 = smul.u32 %s165, 16
        %v167 = vlaneseq
        %v168 = vshrl.u32 %v167, 7
        %v169 = vadd.s32 %v168, 8
        %v170 = vstv %s166
        %v171 = vadd.s32 %v168, %v170
        %v172 = vadd.s32 %v169, %v170
        %v173 = vlaneseq
        %v174 = vand.u32 %v173, 127
        %v175 = vmul.u32 %v171, 128
        %v176 = vmul.u32 %v172, 128
        %v177 = vadd.s32 %v175, %v174
        %v178 = vadd.s32 %v176, %v174
        %v179 = vld [vmem:[%s137] sm:$0xff]
        %v180 = vld [vmem:[%s137 + $0x8] sm:$0xff]
        %vm181 = vcmp.lt.s32.totalorder %v177, 2048
        %vm182 = vcmp.lt.s32.totalorder %v178, 2048
        %v183 = vsub.f32 %v179, 1.0
        %v184 = vsub.f32 %v180, 1.0
        %v185 = vsel %vm181, %v183, 0.0
        %v186 = vsel %vm182, %v184, 0.0
        %v187 = vmul.f32 %v185, %v185
        %v188 = vmul.f32 %v186, %v186
        %v189 = vld [vmem:[%s155] sm:$0xff]
        %v190 = vadd.f32 %v187, %v188
        %v191 = vadd.f32 %v189, %v190
        %192 = vst [vmem:[%s155] sm:$0xff] %v191
        %s193 = sand.u32 %s70, 1
        %s194 = scalar_lea.sflag [#allocation4], %s193
        %s195 = sand.u32 %s70, 1
        %s196 = smul.addr %s195, 8
        %s197 = scalar_lea.vmem [#allocation5], %s196
        // Predicated region
        $region33: #{tpu_custom_call.1} parent=23 // pred_check
          %p198 = pneg %p80
        $region34: #{tpu_custom_call.1} parent=23 // pred_check_branch
          %200 = sbr.rel (%p198) target = $region36
        $region35: #{tpu_custom_call.1} parent=23 // pred_region
          %s202 = ssub.s32 128, 128
          %203 = vsyncadd %s194, %s202
          %s204 = smul.addr %s22, 128
          %s205 = scalar_lea.hbm %s1, %s204
          %s207 = sshll.u32 %s197, 4
          %s208 = int_to_ptr.vmem [resolvable:$true] %s207
          %210 = dma.vmem_to_hbm [thread:$0]  %s208, 128, %s205, %s194
        $region36: #{tpu_custom_call.1} parent=23 // pred_fallthru
          _
      $region24: #{tpu_custom_call.1} parent=5 // pred_fallthru
        _
      %p211 = scmp.le.s32.totalorder 2, %s13
      // Predicated region
      $region37: #{tpu_custom_call.1} parent=5 // pred_check
        %p212 = pneg %p211
      $region38: #{tpu_custom_call.1} parent=5 // pred_check_branch
        %214 = sbr.rel (%p212) target = $region40
      $region39: #{tpu_custom_call.1} parent=5 // pred_region
        %s215 = ssub.s32 %s13, 2
        // Predicated region
        $region41: #{tpu_custom_call.1} parent=39 // pred_check
          %p216 = pneg %p86
        $region42: #{tpu_custom_call.1} parent=39 // pred_check_branch
          %218 = sbr.rel (%p216) target = $region44
        $region43: #{tpu_custom_call.1} parent=39 // pred_region
          %s219 = sand.u32 %s71, 1
          %s220 = scalar_lea.sflag [#allocation4], %s219
          %s221 = sand.u32 %s71, 1
          %s222 = smul.addr %s221, 8
          %s223 = scalar_lea.vmem [#allocation5], %s222
          %224 = dma.done %s220, 128
        $region44: #{tpu_custom_call.1} parent=39 // pred_fallthru
          _
      $region40: #{tpu_custom_call.1} parent=5 // pred_fallthru
        _
    $region6: #{tpu_custom_call.1} parent=1 // loop_footer
      %s17 = sadd.s32 1, %s13
    $region7: #{tpu_custom_call.1} parent=1 // loop_footer_branch
      %12 = sbr.rel target = $region3
    $region8: #{tpu_custom_call.1} parent=1 // loop_exit
      _
    %225 = vsyncpa [#allocation3], 1
    %s226 = scalar_lea.sflag [#allocation3], 1
    %227 = vsyncpa %s226, 1
    %228 = vsyncpa [#allocation4], 1
    %s229 = scalar_lea.sflag [#allocation4], 1
    %230 = vsyncpa %s229, 1

</llo_original>
